<compile_context>
chip_gen: v5e
topology: v5e:2x2
jax: 0.10.0
libtpu: 0.0.40
codegen_flags: <defaults>
</compile_context>

<pallas_src>
import math

import jax
import jax.numpy as jnp
import numpy as np
from jax import lax
from jax.experimental import pallas as pl
from jax.experimental.pallas import tpu as pltpu


def _round_up(x, m):
    return (x + m - 1) // m * m


def _vmem_budget_bytes():
    """Physical VMEM per core with ~25% headroom (generation aware)."""
    try:
        cap = pltpu.get_tpu_info().vmem_capacity_bytes
    except Exception:
        cap = 128 << 20  # v5e/v6e assumption if the query is unavailable
    return int(cap * 3 // 4)  # ~48 MiB on v7x, ~96 MiB on v5e/v6e


def _pick_rep(n_patches, batch, max_rows):
    """Copies of the patch grid per M tile (tm = rep * n_patches).

    rep is a multiple of `base` so tm is sublane-aligned (multiple of 8).
    Preference order: keep >= 2 M-grid blocks (v7x megacore), avoid batch
    padding (rep | batch), then the largest tile that fits `max_rows`.
    """
    base = 8 // math.gcd(n_patches, 8)
    if base * n_patches > max_rows:
        return base
    cands = []
    rep = base
    while rep * n_patches <= max_rows and rep <= max(base, batch):
        cands.append(rep)
        rep += base
    if not cands:
        return base

    def key(r):
        two_blocks = (batch > r) or (batch <= base)
        no_pad = (batch % r == 0)
        return (two_blocks, no_pad, r)

    return max(cands, key=key)


def _pick_tile_k(k, max_tile=2048):
    """Tile the reduction dim only when large; require a 128-multiple divisor."""
    if k <= max_tile:
        return k
    for t in range(max_tile, 127, -128):
        if k % t == 0:
            return t
    return k  # no aligned divisor -> single K step


def _single_step_kernel(p_ref, w_ref, pos_ref, o_ref):
    # p_ref:   (tm, K)       patch-matrix tile (M = B*n_patches collapsed)
    # w_ref:   (K, C_pad)    resident weight (constant index_map)
    # pos_ref: (tm, C_pad)   resident pos + conv-bias (constant index_map), f32
    # o_ref:   (tm, C_pad)   output tile
    acc = lax.dot_general(
        p_ref[...], w_ref[...],
        dimension_numbers=(((1,), (0,)), ((), ())),
        preferred_element_type=jnp.float32)
    o_ref[...] = (acc + pos_ref[...]).astype(o_ref.dtype)


def _make_multi_step_kernel(tk, w_resident):
    def kernel(p_ref, w_ref, pos_ref, o_ref, acc_ref):
        k = pl.program_id(1)

        @pl.when(k == 0)
        def _():
            acc_ref[...] = jnp.zeros_like(acc_ref)

        if w_resident:
            # Weight (K, C_pad) is resident across the whole grid; slice this
            # K tile in-kernel instead of re-DMAing it per M tile.
            koff = pl.multiple_of(k * tk, 128)
            w_tile = w_ref[pl.ds(koff, tk), :]
        else:
            w_tile = w_ref[...]

        acc_ref[...] += lax.dot_general(
            p_ref[...], w_tile,
            dimension_numbers=(((1,), (0,)), ((), ())),
            preferred_element_type=jnp.float32)

        @pl.when(k == pl.num_programs(1) - 1)
        def _():
            o_ref[...] = (acc_ref[...] + pos_ref[...]).astype(o_ref.dtype)

    return kernel


def channel_embeddings(x_nchw, conv_w, conv_b, pos_emb, patch_size,
                       compute_dtype=None):
    """Forward pass of Channel_Embeddings (inference: dropout = identity).

    x_nchw : (B, C_in, H, W)
    conv_w : (C_out, C_in, ph, pw)   with C_out == C_in, (ph, pw) == patch_size
    conv_b : (C_out,)
    pos_emb: (1, n_patches, C_out)
    returns: (B, n_patches, C_out)
    """
    B, C_in, H, W = x_nchw.shape
    ph, pw = patch_size
    gh, gw = H // ph, W // pw
    n_patches = gh * gw
    C_out = conv_w.shape[0]
    K = C_in * ph * pw
    M = B * n_patches

    out_dtype = x_nchw.dtype
    stream_dtype = (jnp.dtype(compute_dtype) if compute_dtype is not None
                    else jnp.dtype(x_nchw.dtype))

    # --- glue: im2col of the stride-p "patchify" conv (crop == VALID) ---
    # TODO(synk): for very large H*W this transpose is an extra full HBM
    # read+write of the input; it could be fused into the kernel by gridding
    # over x_nchw directly and assembling patch rows in VMEM.
    x_crop = x_nchw[:, :, :gh * ph, :gw * pw]
    patches = x_crop.reshape(B, C_in, gh, ph, gw, pw)
    patches = jnp.transpose(patches, (0, 2, 4, 1, 3, 5)).reshape(M, K)
    patches = patches.astype(stream_dtype)

    # --- lane padding of the channel dim (conditional) ---
    if C_out % 128 == 0 or C_out < 128:
        C_pad = C_out            # already lane-aligned, or too small to be worth 32x writes
    else:
        C_pad = _round_up(C_out, 128)

    # Weight: one-time wrapper transpose to (K, C_out) -> native (M,K)x(K,N) matmul.
    w_kn = jnp.transpose(conv_w.reshape(C_out, K)).astype(stream_dtype)
    if C_pad != C_out:
        w_kn = jnp.pad(w_kn, ((0, 0), (0, C_pad - C_out)))

    # Fold the conv bias into the position embeddings (single resident f32 array).
    pos_bias = (pos_emb.reshape(n_patches, C_out)
                + conv_b[None, :]).astype(jnp.float32)
    if C_pad != C_out:
        pos_bias = jnp.pad(pos_bias, ((0, 0), (0, C_pad - C_out)))

    # --- tiling ---
    budget = _vmem_budget_bytes()
    elt = jnp.dtype(stream_dtype).itemsize
    # Keep the double-buffered patch stream under ~half the VMEM budget.
    rows_cap = max(8, ((budget // 2) // max(1, 2 * K * elt)) // 8 * 8)
    max_rows = min(1024, rows_cap)
    rep = _pick_rep(n_patches, B, max_rows)
    tm = rep * n_patches

    B_pad = _round_up(B, rep)
    M_pad = B_pad * n_patches
    if M_pad != M:
        patches = jnp.pad(patches, ((0, M_pad - M), (0, 0)))
    grid_m = M_pad // tm

    # pos(+bias) replicated to exactly one M tile -> constant index_map -> resident.
    pos_tile = jnp.tile(pos_bias, (rep, 1))

    tk = _pick_tile_k(K)
    num_k = K // tk

    if num_k == 1:
        # Common case: single K step -> no accumulator, no zero-init, no RMW.
        kernel = _single_step_kernel
        grid = (grid_m,)
        in_specs = [
            pl.BlockSpec((tm, K), lambda i: (i, 0)),
            pl.BlockSpec((K, C_pad), lambda i: (0, 0)),     # resident weight
            pl.BlockSpec((tm, C_pad), lambda i: (0, 0)),    # resident pos(+bias)
        ]
        out_specs = pl.BlockSpec((tm, C_pad), lambda i: (i, 0))
        scratch_shapes = []
        dim_sem = ("parallel",)
    else:
        w_resident = 2 * K * C_pad * elt <= budget // 2
        kernel = _make_multi_step_kernel(tk, w_resident)
        if w_resident:
            w_spec = pl.BlockSpec((K, C_pad), lambda i, k: (0, 0))   # fetched once
        else:
            w_spec = pl.BlockSpec((tk, C_pad), lambda i, k: (k, 0))  # streamed per K tile
        grid = (grid_m, num_k)  # reduction axis last
        in_specs = [
            pl.BlockSpec((tm, tk), lambda i, k: (i, k)),
            w_spec,
            pl.BlockSpec((tm, C_pad), lambda i, k: (0, 0)),
        ]
        out_specs = pl.BlockSpec((tm, C_pad), lambda i, k: (i, 0))
        scratch_shapes = [pltpu.VMEM((tm, C_pad), jnp.float32)]
        dim_sem = ("parallel", "arbitrary")

    # TODO(synk): training-mode dropout (pltpu.prng_seed + prng_random_bits mask)
    # is not implemented; eval-mode dropout is the identity.
    out = pl.pallas_call(
        kernel,
        out_shape=jax.ShapeDtypeStruct((M_pad, C_pad), out_dtype),
        grid_spec=pltpu.PrefetchScalarGridSpec(
            num_scalar_prefetch=0,
            grid=grid,
            in_specs=in_specs,
            out_specs=out_specs,
            scratch_shapes=scratch_shapes,
        ),
        compiler_params=pltpu.CompilerParams(
            dimension_semantics=dim_sem,
            vmem_limit_bytes=budget),
    )(patches, w_kn, pos_tile)

    # Full-extent slices compile away when no padding was applied.
    return out[:M, :C_out].reshape(B, n_patches, C_out)


def _reference(x_nchw, conv_w, conv_b, pos_emb, patch_size):
    """Pure-JAX reference mirroring the PyTorch forward exactly."""
    y = lax.conv_general_dilated(
        x_nchw, conv_w,
        window_strides=patch_size, padding="VALID",
        dimension_numbers=("NCHW", "OIHW", "NCHW"))
    y = y + conv_b.reshape(1, -1, 1, 1)
    B, C, gh, gw = y.shape
    y = y.reshape(B, C, gh * gw)          # flatten(2)
    y = jnp.transpose(y, (0, 2, 1))       # transpose(-1, -2)
    return y + pos_emb                    # dropout == identity (eval)


if __name__ == "__main__":
    # Small shapes consistent with the module: img_size=16, patch=4, in_channels=4
    B, C_in, H, W = 2, 4, 16, 16
    patch_size = (4, 4)
    gh, gw = H // patch_size[0], W // patch_size[1]
    n_patches = gh * gw                   # 16
    C_out = C_in                          # Conv2d(in_channels, in_channels, ...)

    key = jax.random.PRNGKey(0)
    kx, kw, kb, kp = jax.random.split(key, 4)
    x = jax.random.normal(kx, (B, C_in, H, W), dtype=jnp.float32)
    conv_w = 0.1 * jax.random.normal(
        kw, (C_out, C_in, patch_size[0], patch_size[1]), dtype=jnp.float32)
    conv_b = 0.1 * jax.random.normal(kb, (C_out,), dtype=jnp.float32)
    # PyTorch inits position_embeddings to zeros; small random values exercise
    # the add path (shape matches the module: (1, n_patches, in_channels)).
    pos_emb = 0.01 * jax.random.normal(kp, (1, n_patches, C_out), dtype=jnp.float32)

    fwd = jax.jit(channel_embeddings, static_argnums=(4,))
    out = jax.block_until_ready(fwd(x, conv_w, conv_b, pos_emb, patch_size))

    ref = _reference(x, conv_w, conv_b, pos_emb, patch_size)
    np.testing.assert_allclose(np.asarray(out), np.asarray(ref), rtol=1e-5, atol=1e-5)
    assert out.shape == (B, n_patches, C_out)

    print("KERNEL_OK")
</pallas_src>

<mosaic_0001>
module attributes {stable_mosaic.version = 11 : i64} {
  func.func @_single_step_kernel(%arg0: i32, %arg1: memref<16x64xf32, #tpu.memory_space<vmem>>, %arg2: memref<64x4xf32, #tpu.memory_space<vmem>>, %arg3: memref<16x4xf32, #tpu.memory_space<vmem>>, %arg4: memref<16x4xf32, #tpu.memory_space<vmem>>) attributes {dimension_semantics = [#tpu.dimension_semantics<parallel>], iteration_bounds = array<i64: 2>, scalar_prefetch = 0 : i64, scratch_operands = 0 : i64, tpu.core_type = #tpu.core_type<tc>, window_params = [{transform_indices = @transform_0, window_bounds = array<i64: 16, 64>}, {pipeline_mode = #tpu.pipeline_mode<synchronous>, transform_indices = @transform_1, window_bounds = array<i64: 64, 4>}, {pipeline_mode = #tpu.pipeline_mode<synchronous>, transform_indices = @transform_2, window_bounds = array<i64: 16, 4>}, {transform_indices = @transform_3, window_bounds = array<i64: 16, 4>}]} {
    %c0 = arith.constant 0 : index
    %c0_0 = arith.constant 0 : index
    %0 = vector.load %arg1[%c0, %c0_0] : memref<16x64xf32, #tpu.memory_space<vmem>>, vector<16x64xf32>
    %c0_1 = arith.constant 0 : index
    %c0_2 = arith.constant 0 : index
    %1 = vector.load %arg2[%c0_1, %c0_2] : memref<64x4xf32, #tpu.memory_space<vmem>>, vector<64x4xf32>
    %cst = arith.constant dense<0.000000e+00> : vector<16x4xf32>
    %2 = tpu.matmul %0, %1, %cst {dimension_numbers = #tpu.dot_dimension_numbers<[1], [0], [0], [1], [0, 0, 1, 1], [], []>} : vector<16x64xf32>, vector<64x4xf32>, vector<16x4xf32> -> vector<16x4xf32>
    %c0_3 = arith.constant 0 : index
    %c0_4 = arith.constant 0 : index
    %3 = vector.load %arg3[%c0_3, %c0_4] : memref<16x4xf32, #tpu.memory_space<vmem>>, vector<16x4xf32>
    %4 = arith.addf %2, %3 : vector<16x4xf32>
    %c0_5 = arith.constant 0 : index
    %c0_6 = arith.constant 0 : index
    %5 = vector.load %arg4[%c0_5, %c0_6] : memref<16x4xf32, #tpu.memory_space<vmem>>, vector<16x4xf32>
    tpu.vector_store %arg4[%c0_5, %c0_6], %4 {strides = array<i32>} : memref<16x4xf32, #tpu.memory_space<vmem>>, vector<16x4xf32>,
    return
  }
  func.func @transform_0(%arg0: i32) -> (i32, i32) {
    %c0_i32 = arith.constant 0 : i32
    %c0_i32_0 = arith.constant 0 : i32
    return %arg0, %c0_i32 : i32, i32
  }
  func.func @transform_1(%arg0: i32) -> (i32, i32) {
    %c0_i32 = arith.constant 0 : i32
    %c0_i32_0 = arith.constant 0 : i32
    %c0_i32_1 = arith.constant 0 : i32
    return %c0_i32, %c0_i32_0 : i32, i32
  }
  func.func @transform_2(%arg0: i32) -> (i32, i32) {
    %c0_i32 = arith.constant 0 : i32
    %c0_i32_0 = arith.constant 0 : i32
    %c0_i32_1 = arith.constant 0 : i32
    return %c0_i32, %c0_i32_0 : i32, i32
  }
  func.func @transform_3(%arg0: i32) -> (i32, i32) {
    %c0_i32 = arith.constant 0 : i32
    %c0_i32_0 = arith.constant 0 : i32
    return %arg0, %c0_i32 : i32, i32
  }
}

</mosaic_0001>

<llo_original>
// kernel: channel_embeddings.1
$region0: #{channel_embeddings.1}
  #allocation0 [shape = 'u32[]', space=smem, size = 0x4, offset = 0x4, fixed_abs, tag = 'smem constant byte address 0x4 - core index']
  #allocation1 [shape = 'u32[72,128]{1,0:T(1,128)}', space=vmem, size = 0x9000, scoped, tag = 'internal scratch']
  %s0 = inlined_call_operand.vmem [shape: f32[32,64], index: 0, kind: input, shape index: {}]
  %s1 = inlined_call_operand.vmem [shape: f32[64,4], index: 1, kind: input, shape index: {}]
  %s2 = inlined_call_operand.vmem [shape: f32[16,4], index: 2, kind: input, shape index: {}]
  %s3 = inlined_call_operand.vmem [shape: f32[32,4], index: 3, kind: output, shape index: {}]
  %s4 = sld [smem:[#allocation0]]
  $region45: #{channel_embeddings.1} parent=0
    _
  %s6 = ssub.s32 1, %s4
  %s7 = scalar_select 0, %s6, %s4
  loop: start=0, step=1, limit=4
  $region2: #{channel_embeddings.1} parent=0 // loop_pre_header
    _
  $region3: #{channel_embeddings.1} parent=0 // loop_header
    %s9 = sphi 0, %s13
    %p10 = scmp.ge.s32.totalorder %s9, 4
    %s19 = sphi 0, %s21
    %s22 = sphi 0, %s19
    %s23 = sphi 0, %s22
    %s39 = sphi 0, %s23
    %s43 = sphi 0, %s43
    %s45 = sphi 0, %s43
    %s46 = sphi 0, %s45
    %s60 = sphi 0, %s46
    %s64 = sphi 0, %s64
    %s66 = sphi 0, %s64
    %s67 = sphi 0, %s66
    %s81 = sphi 0, %s67
    %s87 = sphi 0, %s89
    %s90 = sphi 0, %s87
    %s91 = sphi 0, %s90
    %s107 = sphi 0, %s91
  $region4: #{channel_embeddings.1} parent=0 // loop_header_branch
    %12 = sbr.rel (%p10) target = $region8
  $region5: #{channel_embeddings.1} parent=0 // loop_body
    %s14 = ssub.s32 %s9, 1
    %s15 = ssub.s32 %s9, 2
    %s16 = sadd.s32 %s9, 1
    %s17 = ssub.s32 %s9, %s16
    %p18 = scmp.eq.s32.totalorder %s17, 0
    %s20 = sadd.s32 %s19, 1
    %s21 = scalar_select %p18, %s19, %s20
    %p24 = pneg %p18
    %p25 = scmp.eq.s32.totalorder %s9, 1
    %p26 = por %p24, %p25
    %p27 = scmp.ne.s32.totalorder %s19, %s22
    %p28 = scmp.eq.s32.totalorder %s9, 0
    %p29 = por %p27, %p28
    %p30 = scmp.ne.s32.totalorder %s19, %s22
    %p31 = scmp.eq.s32.totalorder %s14, 1
    %p32 = por %p30, %p31
    %p33 = scmp.ne.s32.totalorder %s22, %s23
    %p34 = scmp.eq.s32.totalorder %s14, 0
    %p35 = por %p33, %p34
    %p36 = scmp.ne.s32.totalorder %s22, %s23
    %p37 = scmp.eq.s32.totalorder %s15, 1
    %p38 = por %p36, %p37
    %p40 = scmp.ne.s32.totalorder %s23, %s39
    %p41 = scmp.eq.s32.totalorder %s15, 0
    %p42 = por %p40, %p41
    %s44 = sadd.s32 %s43, 1
    %p47 = scmp.eq.s32.totalorder %s9, 1
    %p48 = scmp.ne.s32.totalorder %s43, %s45
    %p49 = scmp.eq.s32.totalorder %s9, 0
    %p50 = por %p48, %p49
    %p51 = scmp.ne.s32.totalorder %s43, %s45
    %p52 = scmp.eq.s32.totalorder %s14, 1
    %p53 = por %p51, %p52
    %p54 = scmp.ne.s32.totalorder %s45, %s46
    %p55 = scmp.eq.s32.totalorder %s14, 0
    %p56 = por %p54, %p55
    %p57 = scmp.ne.s32.totalorder %s45, %s46
    %p58 = scmp.eq.s32.totalorder %s15, 1
    %p59 = por %p57, %p58
    %p61 = scmp.ne.s32.totalorder %s46, %s60
    %p62 = scmp.eq.s32.totalorder %s15, 0
    %p63 = por %p61, %p62
    %s65 = sadd.s32 %s64, 1
    %p68 = scmp.eq.s32.totalorder %s9, 1
    %p69 = scmp.ne.s32.totalorder %s64, %s66
    %p70 = scmp.eq.s32.totalorder %s9, 0
    %p71 = por %p69, %p70
    %p72 = scmp.ne.s32.totalorder %s64, %s66
    %p73 = scmp.eq.s32.totalorder %s14, 1
    %p74 = por %p72, %p73
    %p75 = scmp.ne.s32.totalorder %s66, %s67
    %p76 = scmp.eq.s32.totalorder %s14, 0
    %p77 = por %p75, %p76
    %p78 = scmp.ne.s32.totalorder %s66, %s67
    %p79 = scmp.eq.s32.totalorder %s15, 1
    %p80 = por %p78, %p79
    %p82 = scmp.ne.s32.totalorder %s67, %s81
    %p83 = scmp.eq.s32.totalorder %s15, 0
    %p84 = por %p82, %p83
    %s85 = ssub.s32 %s9, %s16
    %p86 = scmp.eq.s32.totalorder %s85, 0
    %s88 = sadd.s32 %s87, 1
    %s89 = scalar_select %p86, %s87, %s88
    %p92 = pneg %p86
    %p93 = scmp.eq.s32.totalorder %s9, 1
    %p94 = por %p92, %p93
    %p95 = scmp.ne.s32.totalorder %s87, %s90
    %p96 = scmp.eq.s32.totalorder %s9, 0
    %p97 = por %p95, %p96
    %p98 = scmp.ne.s32.totalorder %s87, %s90
    %p99 = scmp.eq.s32.totalorder %s14, 1
    %p100 = por %p98, %p99
    %p101 = scmp.ne.s32.totalorder %s90, %s91
    %p102 = scmp.eq.s32.totalorder %s14, 0
    %p103 = por %p101, %p102
    %p104 = scmp.ne.s32.totalorder %s90, %s91
    %p105 = scmp.eq.s32.totalorder %s15, 1
    %p106 = por %p104, %p105
    %p108 = scmp.ne.s32.totalorder %s91, %s107
    %p109 = scmp.eq.s32.totalorder %s15, 0
    %p110 = por %p108, %p109
    %p111 = scmp.le.s32.totalorder 1, %s9
    %p112 = scmp.lt.s32.totalorder %s9, 3
    %p113 = pnand %p111, %p112
    %p114 = pneg %p113
    // Predicated region
    $region9: #{channel_embeddings.1} parent=5 // pred_check
      _
    $region10: #{channel_embeddings.1} parent=5 // pred_check_branch
      %116 = sbr.rel (%p113) target = $region12
    $region11: #{channel_embeddings.1} parent=5 // pred_region
      %s117 = ssub.s32 %s9, 1
      // Predicated region
      $region13: #{channel_embeddings.1} parent=11 // pred_check
        %p118 = pneg %p56
      $region14: #{channel_embeddings.1} parent=11 // pred_check_branch
        %120 = sbr.rel (%p118) target = $region16
      $region15: #{channel_embeddings.1} parent=11 // pred_region
        _
      $region16: #{channel_embeddings.1} parent=11 // pred_fallthru
        _
      // Predicated region
      $region17: #{channel_embeddings.1} parent=11 // pred_check
        %p121 = pneg %p77
      $region18: #{channel_embeddings.1} parent=11 // pred_check_branch
        %123 = sbr.rel (%p121) target = $region20
      $region19: #{channel_embeddings.1} parent=11 // pred_region
        _
      $region20: #{channel_embeddings.1} parent=11 // pred_fallthru
        _
    $region12: #{channel_embeddings.1} parent=5 // pred_fallthru
      _
    %p124 = scmp.lt.s32.totalorder %s9, 2
    // Predicated region
    $region21: #{channel_embeddings.1} parent=5 // pred_check
      %p125 = pneg %p124
    $region22: #{channel_embeddings.1} parent=5 // pred_check_branch
      %127 = sbr.rel (%p125) target = $region24
    $region23: #{channel_embeddings.1} parent=5 // pred_region
      // Predicated region
      $region25: #{channel_embeddings.1} parent=23 // pred_check
        %p128 = pneg %p29
      $region26: #{channel_embeddings.1} parent=23 // pred_check_branch
        %130 = sbr.rel (%p128) target = $region28
      $region27: #{channel_embeddings.1} parent=23 // pred_region
        %s131 = smul.u32 2, %s9
        %p132 = scmp.lt.s32.totalorder %s131, 3
        %s133 = scalar_select %p132, %s131, 3
        %s134 = smul.addr %s133, 8
        %s135 = scalar_lea.vmem %s0, %s134
        %s136 = smul.u32 2, %s9
      $region28: #{channel_embeddings.1} parent=23 // pred_fallthru
        _
    $region24: #{channel_embeddings.1} parent=5 // pred_fallthru
      _
    %p137 = scmp.le.s32.totalorder 1, %s9
    %p138 = scmp.lt.s32.totalorder %s9, 3
    %p139 = pnand %p137, %p138
    %p140 = pneg %p139
    // Predicated region
    $region29: #{channel_embeddings.1} parent=5 // pred_check
      _
    $region30: #{channel_embeddings.1} parent=5 // pred_check_branch
      %142 = sbr.rel (%p139) target = $region32
    $region31: #{channel_embeddings.1} parent=5 // pred_region
      %s143 = ssub.s32 %s9, 1
      %s144 = smul.u32 2, %s14
      %p145 = scmp.lt.s32.totalorder %s144, 3
      %s146 = scalar_select %p145, %s144, 3
      %s147 = smul.addr %s146, 8
      %s148 = scalar_lea.vmem %s0, %s147
      %p149 = pneg %p35
      %p150 = pneg %p32
      %p151 = pneg %p56
      %p152 = pneg %p53
      %p153 = pneg %p77
      %p154 = pneg %p74
      %p155 = pneg %p103
      %p156 = pneg %p100
      %s157 = smul.u32 2, %s14
      %p158 = scmp.lt.s32.totalorder %s157, 3
      %s159 = scalar_select %p158, %s157, 3
      %s160 = smul.addr %s159, 8
      %s161 = scalar_lea.vmem %s3, %s160
      %s162 = smul.u32 2, %s14
      %p163 = scmp.lt.s32.totalorder %s162, 3
      %s164 = scalar_select %p163, %s162, 3
      %s165 = smul.addr %s164, 8
      %s166 = scalar_lea.vmem %s0, %s165
      %s167 = smul.u32 2, %s14
      %s168 = smul.u32 2, %s14
      %p169 = scmp.lt.s32.totalorder %s168, 3
      %s170 = scalar_select %p169, %s168, 3
      %s171 = smul.addr %s170, 8
      %s172 = scalar_lea.vmem %s3, %s171
      %s173 = smul.u32 2, %s14
      %v174 = vld [vmem:[%s166] sm:$0xff]
      %v175 = vld [vmem:[%s166 + $0x8] sm:$0xff]
      %v176 = vld [vmem:[%s1] sm:$0xff]
      %v177 = vld [vmem:[%s1 + $0x8] sm:$0xff]
      %v178 = vld [vmem:[%s1 + $0x10] sm:$0xff]
      %v179 = vld [vmem:[%s1 + $0x18] sm:$0xff]
      %v180 = vld [vmem:[%s1 + $0x20] sm:$0xff]
      %v181 = vld [vmem:[%s1 + $0x28] sm:$0xff]
      %v182 = vld [vmem:[%s1 + $0x30] sm:$0xff]
      %v183 = vld [vmem:[%s1 + $0x38] sm:$0xff]
      %v184 = vld [vmem:[%s2] sm:$0xff]
      %v185 = vld [vmem:[%s2 + $0x8] sm:$0xff]
      %vm186 = vcmask 523264
      %v188 = vsel %vm186, %v174, 0
      %v191 = vsel %vm186, %v175, 0
      %193 = vmatpush.msra.mxu0 0.0
      %194 = vmatpush.msra.mxu0 0.0
      %195 = vmatpush.msra.mxu0 0.0
      %196 = vmatpush.msra.mxu0 0.0
      %197 = vmatpush.msra.mxu0 0.0
      %198 = vmatpush.msra.mxu0 0.0
      %199 = vmatpush.msra.mxu0 0.0
      %200 = vmatpush.msra.mxu0 0.0
      %201 = vmatpush.msra.mxu0 %v183
      %202 = vmatpush.msra.mxu0 %v182
      %203 = vmatpush.msra.mxu0 %v181
      %204 = vmatpush.msra.mxu0 %v180
      %205 = vmatpush.msra.mxu0 %v179
      %206 = vmatpush.msra.mxu0 %v178
      %207 = vmatpush.msra.mxu0 %v177
      %208 = vmatpush.msra.mxu0 %v176
      %209 = vmatmul.f32.gmra.mxu0 %v188
      %v210 = vpop.f32.mrf.mxu0
      %v211 = vadd.f32 %v184, %v210
      %212 = vmatmul.f32.gmra.mxu0 %v191
      %v213 = vpop.f32.mrf.mxu0
      %v214 = vadd.f32 %v185, %v213
      %215 = vdwg.mxu0
      %vm216 = vcmask 31744
      %217 = vst.msk [vmem:[%s172] sm:$0xff] %vm216, %v211
      %218 = vst.msk [vmem:[%s172 + $0x8] sm:$0xff] %vm216, %v214
      %s219 = smul.u32 2, %s14
      %p220 = scmp.lt.s32.totalorder %s219, 3
      %s221 = scalar_select %p220, %s219, 3
      %s222 = smul.addr %s221, 8
      %s223 = scalar_lea.vmem %s3, %s222
      // Predicated region
      $region33: #{channel_embeddings.1} parent=31 // pred_check
        %p224 = pneg %p100
      $region34: #{channel_embeddings.1} parent=31 // pred_check_branch
        %226 = sbr.rel (%p224) target = $region36
      $region35: #{channel_embeddings.1} parent=31 // pred_region
        %s227 = smul.u32 2, %s14
      $region36: #{channel_embeddings.1} parent=31 // pred_fallthru
        _
    $region32: #{channel_embeddings.1} parent=5 // pred_fallthru
      _
    %p228 = scmp.le.s32.totalorder 2, %s9
    // Predicated region
    $region37: #{channel_embeddings.1} parent=5 // pred_check
      %p229 = pneg %p228
    $region38: #{channel_embeddings.1} parent=5 // pred_check_branch
      %231 = sbr.rel (%p229) target = $region40
    $region39: #{channel_embeddings.1} parent=5 // pred_region
      %s232 = ssub.s32 %s9, 2
      // Predicated region
      $region41: #{channel_embeddings.1} parent=39 // pred_check
        %p233 = pneg %p106
      $region42: #{channel_embeddings.1} parent=39 // pred_check_branch
        %235 = sbr.rel (%p233) target = $region44
      $region43: #{channel_embeddings.1} parent=39 // pred_region
        %s236 = smul.u32 2, %s15
        %p237 = scmp.lt.s32.totalorder %s236, 3
        %s238 = scalar_select %p237, %s236, 3
        %s239 = smul.addr %s238, 8
        %s240 = scalar_lea.vmem %s3, %s239
      $region44: #{channel_embeddings.1} parent=39 // pred_fallthru
        _
    $region40: #{channel_embeddings.1} parent=5 // pred_fallthru
      _
  $region6: #{channel_embeddings.1} parent=0 // loop_footer
    %s13 = sadd.s32 1, %s9
  $region7: #{channel_embeddings.1} parent=0 // loop_footer_branch
    %8 = sbr.rel target = $region3
  $region8: #{channel_embeddings.1} parent=0 // loop_exit
    _

</llo_original>
